<compile_context>
chip_gen: v7x
topology: tpu7x:2x2x1
jax: 0.10.0
libtpu: 0.0.40
codegen_flags: <defaults>
</compile_context>

<pallas_src>
import functools

import jax
import jax.numpy as jnp
from jax.experimental import pallas as pl
from jax.experimental.pallas import tpu as pltpu

BN_EPS = 1e-5
VMEM_BUDGET = 48 * 1024 * 1024  # headroom under v7x's 64 MiB physical VMEM


def _fused_linear_bn_kernel(x_ref, w_ref, g_ref, be_ref, o_ref, *scratch,
                            relu, tk, tn, k_steps, n_steps):
    """One (Linear -> BN(train) [-> ReLU]) output tile; grid = (n_tiles, k_tiles)."""
    n = pl.program_id(0)
    k = pl.program_id(1)
    # f32 outputs accumulate directly into the resident output tile (its block
    # index is constant across k); bf16 outputs use an f32 VMEM scratch.
    acc_ref = scratch[0] if scratch else o_ref

    @pl.when(k == 0)
    def _():
        acc_ref[...] = jnp.zeros_like(acc_ref)

    # x is resident in VMEM for the whole grid (constant index_map); slice the
    # current K-chunk in-kernel instead of re-streaming it from HBM per n tile.
    if k_steps == 1:
        x_blk = x_ref[...]
    else:
        x_blk = x_ref[:, pl.ds(pl.multiple_of(k * tk, tk), tk)]

    # bf16 x bf16 -> f32 accumulate on the MXU.
    acc_ref[...] += jnp.dot(x_blk, w_ref[...], preferred_element_type=jnp.float32)

    @pl.when(k == k_steps - 1)
    def _():
        h = acc_ref[...]  # [B, tn] f32, full K reduction done
        if n_steps == 1:
            g = g_ref[...]
            be = be_ref[...]
        else:
            off = pl.multiple_of(n * tn, tn)
            g = g_ref[:, pl.ds(off, tn)]
            be = be_ref[:, pl.ds(off, tn)]
        # Training-mode BN over the batch axis (biased variance), folded into a
        # per-feature scale/shift so only 2 full-tensor VPU passes remain.
        mean = jnp.mean(h, axis=0, keepdims=True)
        # One-pass variance clamped at 0: f32 cancellation can otherwise give a
        # tiny negative value and rsqrt -> NaN.
        var = jnp.maximum(jnp.mean(h * h, axis=0, keepdims=True) - mean * mean, 0.0)
        scale = jax.lax.rsqrt(var + BN_EPS) * g
        shift = be - mean * scale
        h = h * scale + shift
        if relu:
            h = jnp.maximum(h, 0.0)
        o_ref[...] = h.astype(o_ref.dtype)


def _tile_candidates(dim, pref):
    """128-multiple divisors of `dim` up to `pref`, largest first; falls back
    to the full dim (always a legal block size) when none exist."""
    cands = [t for t in range(128, min(dim, pref) + 1, 128) if dim % t == 0]
    return sorted(cands, reverse=True) if cands else [dim]


def _vmem_estimate(B, K, N, tk, tn, out_itemsize, weight_buffers):
    return (2 * B * K * 2                              # resident bf16 x (<=2 bufs)
            + max(2, weight_buffers) * tk * tn * 2     # streamed bf16 weight tiles
            + 2 * 2 * N * 4                            # resident gamma/beta (f32)
            + B * tn * 4                               # f32 accumulator / f32 out
            + 2 * B * tn * out_itemsize)               # output tile (<=2 bufs)


def _pick_tiles(B, K, N, tn_pref, tk_pref, out_itemsize, weight_buffers,
                vmem_budget):
    # tn: largest 128-multiple divisor <= tn_pref, preferring >= 2 output
    # feature tiles so the "parallel" axis can split across v7x's 2 TCs.
    tn_cands = _tile_candidates(N, tn_pref)
    tn = next((t for t in tn_cands if N // t >= 2), tn_cands[0])
    # tk: largest 128-multiple divisor <= tk_pref whose estimated VMEM
    # footprint stays in budget (v7x has only 64 MiB physical VMEM).
    tk_cands = _tile_candidates(K, tk_pref)
    tk = tk_cands[-1]
    for t in tk_cands:
        if _vmem_estimate(B, K, N, t, tn, out_itemsize, weight_buffers) <= vmem_budget:
            tk = t
            break
    return tn, tk


def fused_linear_bn(x, w, gamma, beta, *, relu, out_dtype,
                    tn_pref=512, tk_pref=1024, weight_buffers=2,
                    vmem_budget=VMEM_BUDGET):
    """x: [B, K] bf16, w: [K, N] bf16, gamma/beta: [1, N] f32 -> [B, N] out_dtype."""
    B, K = x.shape
    Kw, N = w.shape
    assert K == Kw
    assert gamma.shape == (1, N) and beta.shape == (1, N)

    out_itemsize = jnp.dtype(out_dtype).itemsize
    tn, tk = _pick_tiles(B, K, N, tn_pref, tk_pref, out_itemsize,
                         weight_buffers, vmem_budget)
    n_steps, k_steps = N // tn, K // tk
    grid = (n_steps, k_steps)

    acc_in_out = jnp.dtype(out_dtype) == jnp.float32
    scratch_shapes = [] if acc_in_out else [pltpu.VMEM((B, tn), jnp.float32)]

    # Optional deeper weight pipelining (v6e: hides the weight-tile DMA tail
    # once tiles are large). Default 2 keeps the standard double buffer.
    w_spec_kwargs = {}
    if weight_buffers > 2 and k_steps >= weight_buffers:
        w_spec_kwargs["pipeline_mode"] = pl.Buffered(weight_buffers)

    kernel = functools.partial(_fused_linear_bn_kernel, relu=relu, tk=tk, tn=tn,
                               k_steps=k_steps, n_steps=n_steps)

    return pl.pallas_call(
        kernel,
        out_shape=jax.ShapeDtypeStruct((B, N), out_dtype),
        grid_spec=pltpu.PrefetchScalarGridSpec(
            num_scalar_prefetch=0,
            grid=grid,
            in_specs=[
                # activations: one resident (B, K) block, DMA'd once per layer
                pl.BlockSpec((B, K), lambda n, k: (0, 0)),
                # weights: streamed (tk, tn) bf16 tiles, pipelined vs the MXU
                pl.BlockSpec((tk, tn), lambda n, k: (k, n), **w_spec_kwargs),
                # gamma / beta: resident full rows, DMA'd once per layer
                pl.BlockSpec((1, N), lambda n, k: (0, 0)),
                pl.BlockSpec((1, N), lambda n, k: (0, 0)),
            ],
            out_specs=pl.BlockSpec((B, tn), lambda n, k: (0, n)),
            scratch_shapes=scratch_shapes,
        ),
        compiler_params=pltpu.CompilerParams(
            # N axis parallel (megacore split on v7x), K reduction arbitrary.
            dimension_semantics=("parallel", "arbitrary"),
            vmem_limit_bytes=vmem_budget,
        ),
    )(x, w, gamma, beta)


def projection_mlp(x, params, *, tn_pref=512, tk_pref=1024, weight_buffers=2):
    """Forward pass of SimSiam projection_MLP (train-mode BN). x: [B, in_dim] f32."""
    bf16 = jnp.bfloat16
    kw = dict(tn_pref=tn_pref, tk_pref=tk_pref, weight_buffers=weight_buffers)
    # Weights are stored bf16 by init_params, so these asarray calls are no-ops
    # (no per-forward f32->bf16 HBM copies).
    w1 = jnp.asarray(params["w1"], bf16)
    w2 = jnp.asarray(params["w2"], bf16)
    w3 = jnp.asarray(params["w3"], bf16)
    # NOTE: b1/b2/b3 are intentionally unused -- a pre-BN per-feature bias is
    # cancelled exactly by the batch-mean subtraction in training-mode BN.

    # layer1: Linear -> BN -> ReLU   (activations stored bf16 for the next MXU pass)
    h = fused_linear_bn(x.astype(bf16), w1, params["g1"], params["be1"],
                        relu=True, out_dtype=bf16, **kw)
    # layer2: Linear -> BN -> ReLU
    h = fused_linear_bn(h, w2, params["g2"], params["be2"],
                        relu=True, out_dtype=bf16, **kw)
    # layer3: Linear -> BN (no ReLU), final output in f32
    out = fused_linear_bn(h, w3, params["g3"], params["be3"],
                          relu=False, out_dtype=jnp.float32, **kw)
    return out


def init_params(key, in_dim, hidden_dim, out_dim):
    # SimSiam's projection_MLP uses BatchNorm1d(hidden_dim) after the third
    # Linear, which only type-checks when out_dim == hidden_dim.
    assert out_dim == hidden_dim, "layer3 BN requires out_dim == hidden_dim"

    keys = jax.random.split(key, 6)

    def linear(kw_, kb_, fan_in, fan_out):
        # PyTorch nn.Linear default init: U(-1/sqrt(fan_in), 1/sqrt(fan_in)).
        # Weights are stored bf16 (the dtype the kernel consumes) so no per-call
        # cast / extra HBM copy is needed at forward time.
        bound = 1.0 / jnp.sqrt(jnp.float32(fan_in))
        w = jax.random.uniform(kw_, (fan_in, fan_out), jnp.float32, -bound, bound)
        b = jax.random.uniform(kb_, (1, fan_out), jnp.float32, -bound, bound)
        return w.astype(jnp.bfloat16), b

    w1, b1 = linear(keys[0], keys[1], in_dim, hidden_dim)
    w2, b2 = linear(keys[2], keys[3], hidden_dim, hidden_dim)
    w3, b3 = linear(keys[4], keys[5], hidden_dim, out_dim)

    ones = lambda n: jnp.ones((1, n), jnp.float32)
    zeros = lambda n: jnp.zeros((1, n), jnp.float32)

    return dict(
        w1=w1, b1=b1, g1=ones(hidden_dim), be1=zeros(hidden_dim),
        w2=w2, b2=b2, g2=ones(hidden_dim), be2=zeros(hidden_dim),
        w3=w3, b3=b3, g3=ones(out_dim), be3=zeros(out_dim),
    )


def projection_mlp_ref(x, p):
    """Pure-JAX reference, faithful to PyTorch semantics (biases included,
    two-pass variance), using the same bf16 matmul precision as the kernel so
    the comparison is tight."""
    def bn(h, g, be):
        m = jnp.mean(h, axis=0, keepdims=True)
        v = jnp.mean((h - m) ** 2, axis=0, keepdims=True)
        return (h - m) / jnp.sqrt(v + BN_EPS) * g + be

    def lin(h, w, b):
        return jnp.dot(h.astype(jnp.bfloat16), w.astype(jnp.bfloat16),
                       preferred_element_type=jnp.float32) + b

    h = jnp.maximum(bn(lin(x, p["w1"], p["b1"]), p["g1"], p["be1"]), 0.0)
    h = h.astype(jnp.bfloat16).astype(jnp.float32)  # mirror bf16 activation storage
    h = jnp.maximum(bn(lin(h, p["w2"], p["b2"]), p["g2"], p["be2"]), 0.0)
    h = h.astype(jnp.bfloat16).astype(jnp.float32)
    return bn(lin(h, p["w3"], p["b3"]), p["g3"], p["be3"])


if __name__ == "__main__":
    # Small shapes (128-multiples) chosen so the tiled grid is exercised with
    # tn_pref=tk_pref=128: layer1 grid (2,1); layers 2/3 grid (2,2) with K
    # accumulation across two tiles, in-kernel x/gamma/beta slicing, the bf16
    # scratch-accumulator path (layers 1/2) and the f32 accumulate-into-output
    # path (layer 3).
    B, in_dim, hidden_dim, out_dim = 8, 128, 256, 256

    key = jax.random.PRNGKey(0)
    kx, kp = jax.random.split(key)
    x = jax.random.normal(kx, (B, in_dim), jnp.float32)
    params = init_params(kp, in_dim, hidden_dim, out_dim)

    out = projection_mlp(x, params, tn_pref=128, tk_pref=128)
    out = jax.block_until_ready(out)

    ref = projection_mlp_ref(x, params)
    assert out.shape == (B, out_dim)
    # Tolerance covers bf16 activation rounding, bias-folding, and the
    # one-pass-variance form (all tiny after BN renormalization).
    assert jnp.allclose(out, ref, atol=5e-3, rtol=5e-3), (
        f"mismatch vs reference: max abs err = {float(jnp.max(jnp.abs(out - ref)))}"
    )

    # TODO(synk): BatchNorm1d running_mean/running_var buffer updates (a
    # training-time side effect) are not materialized; they do not affect the
    # train-mode forward output.

    print("KERNEL_OK")
</pallas_src>

<mosaic_0001>
module attributes {stable_mosaic.version = 11 : i64} {
  func.func @_fused_linear_bn_kernel(%arg0: i32, %arg1: i32, %arg2: memref<8x128xbf16, #tpu.memory_space<vmem>>, %arg3: memref<128x128xbf16, #tpu.memory_space<vmem>>, %arg4: memref<1x256xf32, #tpu.memory_space<vmem>>, %arg5: memref<1x256xf32, #tpu.memory_space<vmem>>, %arg6: memref<8x128xbf16, #tpu.memory_space<vmem>>, %arg7: memref<8x128xf32, #tpu.memory_space<vmem>>) attributes {dimension_semantics = [#tpu.dimension_semantics<parallel>, #tpu.dimension_semantics<arbitrary>], iteration_bounds = array<i64: 2, 1>, scalar_prefetch = 0 : i64, scratch_operands = 1 : i64, tpu.core_type = #tpu.core_type<tc>, window_params = [{pipeline_mode = #tpu.pipeline_mode<synchronous>, transform_indices = @transform_0, window_bounds = array<i64: 8, 128>}, {transform_indices = @transform_1, window_bounds = array<i64: 128, 128>}, {pipeline_mode = #tpu.pipeline_mode<synchronous>, transform_indices = @transform_2, window_bounds = array<i64: 1, 256>}, {pipeline_mode = #tpu.pipeline_mode<synchronous>, transform_indices = @transform_3, window_bounds = array<i64: 1, 256>}, {transform_indices = @transform_4, window_bounds = array<i64: 8, 128>}]} {
    %c0_i32 = arith.constant 0 : i32
    %0 = arith.cmpi eq, %arg1, %c0_i32 : i32
    %1 = arith.extui %0 : i1 to i32
    %c0_i32_0 = arith.constant 0 : i32
    %2 = arith.cmpi ne, %1, %c0_i32_0 : i32
    scf.if %2 {
      %cst_10 = arith.constant 0.000000e+00 : f32
      %12 = vector.broadcast %cst_10 : f32 to vector<8x128xf32>
      %c0_11 = arith.constant 0 : index
      %c0_12 = arith.constant 0 : index
      %13 = vector.load %arg7[%c0_11, %c0_12] : memref<8x128xf32, #tpu.memory_space<vmem>>, vector<8x128xf32>
      tpu.vector_store %arg7[%c0_11, %c0_12], %12 {strides = array<i32>} : memref<8x128xf32, #tpu.memory_space<vmem>>, vector<8x128xf32>,
    } else {
    }
    %c0 = arith.constant 0 : index
    %c0_1 = arith.constant 0 : index
    %3 = vector.load %arg2[%c0, %c0_1] : memref<8x128xbf16, #tpu.memory_space<vmem>>, vector<8x128xbf16>
    %c0_2 = arith.constant 0 : index
    %c0_3 = arith.constant 0 : index
    %4 = vector.load %arg7[%c0_2, %c0_3] : memref<8x128xf32, #tpu.memory_space<vmem>>, vector<8x128xf32>
    %c0_4 = arith.constant 0 : index
    %c0_5 = arith.constant 0 : index
    %5 = vector.load %arg3[%c0_4, %c0_5] : memref<128x128xbf16, #tpu.memory_space<vmem>>, vector<128x128xbf16>
    %cst = arith.constant dense<0.000000e+00> : vector<8x128xf32>
    %6 = tpu.matmul %3, %5, %cst {dimension_numbers = #tpu.dot_dimension_numbers<[1], [0], [0], [1], [0, 0, 1, 1], [], []>} : vector<8x128xbf16>, vector<128x128xbf16>, vector<8x128xf32> -> vector<8x128xf32>
    %7 = arith.addf %4, %6 : vector<8x128xf32>
    %c0_6 = arith.constant 0 : index
    %c0_7 = arith.constant 0 : index
    %8 = vector.load %arg7[%c0_6, %c0_7] : memref<8x128xf32, #tpu.memory_space<vmem>>, vector<8x128xf32>
    tpu.vector_store %arg7[%c0_6, %c0_7], %7 {strides = array<i32>} : memref<8x128xf32, #tpu.memory_space<vmem>>, vector<8x128xf32>,
    %c0_i32_8 = arith.constant 0 : i32
    %9 = arith.cmpi eq, %arg1, %c0_i32_8 : i32
    %10 = arith.extui %9 : i1 to i32
    %c0_i32_9 = arith.constant 0 : i32
    %11 = arith.cmpi ne, %10, %c0_i32_9 : i32
    scf.if %11 {
      %c0_10 = arith.constant 0 : index
      %c0_11 = arith.constant 0 : index
      %12 = vector.load %arg7[%c0_10, %c0_11] : memref<8x128xf32, #tpu.memory_space<vmem>>, vector<8x128xf32>
      %c128_i32 = arith.constant 128 : i32
      %13 = arith.muli %arg0, %c128_i32 : i32
      %14 = tpu.assume_multiple %13, 128 : i32
      %c0_12 = arith.constant 0 : index
      %15 = arith.index_cast %14 : i32 to index
      %16 = vector.load %arg4[%c0_12, %15] : memref<1x256xf32, #tpu.memory_space<vmem>>, vector<1x128xf32>
      %c0_13 = arith.constant 0 : index
      %17 = arith.index_cast %14 : i32 to index
      %18 = vector.load %arg5[%c0_13, %17] : memref<1x256xf32, #tpu.memory_space<vmem>>, vector<1x128xf32>
      %cst_14 = arith.constant dense<0.000000e+00> : vector<128xf32>
      %19 = vector.multi_reduction <add>, %12, %cst_14 [0] : vector<8x128xf32> to vector<128xf32>
      %20 = vector.shape_cast %19 : vector<128xf32> to vector<1x128xf32>
      %cst_15 = arith.constant 8.000000e+00 : f32
      %21 = vector.broadcast %cst_15 : f32 to vector<1x128xf32>
      %22 = arith.divf %20, %21 : vector<1x128xf32>
      %23 = arith.mulf %12, %12 : vector<8x128xf32>
      %cst_16 = arith.constant dense<0.000000e+00> : vector<128xf32>
      %24 = vector.multi_reduction <add>, %23, %cst_16 [0] : vector<8x128xf32> to vector<128xf32>
      %25 = vector.shape_cast %24 : vector<128xf32> to vector<1x128xf32>
      %cst_17 = arith.constant 8.000000e+00 : f32
      %26 = vector.broadcast %cst_17 : f32 to vector<1x128xf32>
      %27 = arith.divf %25, %26 : vector<1x128xf32>
      %28 = arith.mulf %22, %22 : vector<1x128xf32>
      %29 = arith.subf %27, %28 : vector<1x128xf32>
      %cst_18 = arith.constant 0.000000e+00 : f32
      %30 = vector.broadcast %cst_18 : f32 to vector<1x128xf32>
      %31 = arith.maximumf %29, %30 : vector<1x128xf32>
      %cst_19 = arith.constant 9.99999974E-6 : f32
      %32 = vector.broadcast %cst_19 : f32 to vector<1x128xf32>
      %33 = arith.addf %31, %32 : vector<1x128xf32>
      %34 = math.rsqrt %33 : vector<1x128xf32>
      %35 = arith.mulf %34, %16 : vector<1x128xf32>
      %36 = arith.mulf %22, %35 : vector<1x128xf32>
      %37 = arith.subf %18, %36 : vector<1x128xf32>
      %38 = vector.broadcast %35 : vector<1x128xf32> to vector<8x128xf32>
      %39 = arith.mulf %12, %38 : vector<8x128xf32>
      %40 = vector.broadcast %37 : vector<1x128xf32> to vector<8x128xf32>
      %41 = arith.addf %39, %40 : vector<8x128xf32>
      %cst_20 = arith.constant 0.000000e+00 : f32
      %42 = vector.broadcast %cst_20 : f32 to vector<8x128xf32>
      %43 = arith.maximumf %41, %42 : vector<8x128xf32>
      %44 = arith.truncf %43 : vector<8x128xf32> to vector<8x128xbf16>
      %c0_21 = arith.constant 0 : index
      %c0_22 = arith.constant 0 : index
      %45 = vector.load %arg6[%c0_21, %c0_22] : memref<8x128xbf16, #tpu.memory_space<vmem>>, vector<8x128xbf16>
      tpu.vector_store %arg6[%c0_21, %c0_22], %44 {strides = array<i32>} : memref<8x128xbf16, #tpu.memory_space<vmem>>, vector<8x128xbf16>,
    } else {
    }
    return
  }
  func.func @transform_0(%arg0: i32, %arg1: i32) -> (i32, i32) {
    %c0_i32 = arith.constant 0 : i32
    %c0_i32_0 = arith.constant 0 : i32
    %c0_i32_1 = arith.constant 0 : i32
    return %c0_i32, %c0_i32_0 : i32, i32
  }
  func.func @transform_1(%arg0: i32, %arg1: i32) -> (i32, i32) {
    %c0_i32 = arith.constant 0 : i32
    return %arg1, %arg0 : i32, i32
  }
  func.func @transform_2(%arg0: i32, %arg1: i32) -> (i32, i32) {
    %c0_i32 = arith.constant 0 : i32
    %c0_i32_0 = arith.constant 0 : i32
    %c0_i32_1 = arith.constant 0 : i32
    return %c0_i32, %c0_i32_0 : i32, i32
  }
  func.func @transform_3(%arg0: i32, %arg1: i32) -> (i32, i32) {
    %c0_i32 = arith.constant 0 : i32
    %c0_i32_0 = arith.constant 0 : i32
    %c0_i32_1 = arith.constant 0 : i32
    return %c0_i32, %c0_i32_0 : i32, i32
  }
  func.func @transform_4(%arg0: i32, %arg1: i32) -> (i32, i32) {
    %c0_i32 = arith.constant 0 : i32
    %c0_i32_0 = arith.constant 0 : i32
    return %c0_i32, %arg0 : i32, i32
  }
}

</mosaic_0001>

<llo_original>
// kernel: tpu_custom_call.1
$region0: #{tpu_custom_call.1}
  #allocation0 [shape = 'u32[]', space=smem, size = 0x4, offset = 0x4, fixed_abs, tag = 'smem constant byte address 0x4 - core index']
  #allocation1 [shape = 'u32[144,128]{1,0:T(1,128)}', space=vmem, size = 0x12000, scoped, tag = 'internal scratch']
  #allocation2 [shape = 'f32[8,128]{1,0:T(8,128)}', space=vmem, size = 0x1000, scoped, tag = 'scratch operand']
  %s0 = inlined_call_operand.hbm [shape: bf16[8,128], index: 0, kind: input, shape index: {}]
  %s1 = inlined_call_operand.hbm [shape: bf16[128,256], index: 1, kind: input, shape index: {}]
  %s2 = inlined_call_operand.vmem [shape: f32[1,256], index: 2, kind: input, shape index: {}]
  %s3 = inlined_call_operand.vmem [shape: f32[1,256], index: 3, kind: input, shape index: {}]
  %s4 = inlined_call_operand.hbm [shape: bf16[8,256], index: 4, kind: output, shape index: {}]
  %s5 = sld [smem:[#allocation0]]
  $region65: #{tpu_custom_call.1} parent=0
    _
  %s7 = ssub.s32 1, %s5
  %s8 = scalar_select 0, %s7, %s5
  $region1: #{tpu_custom_call.1} parent=0
    #allocation3 [shape = 'u8[2048]{0}', space=vmem, size = 0x800, scoped, tag = 'input window, operand 0, single buffered']
    #allocation4 [shape = 's32[2]{0}', space=sflag, size = 0x8, scoped, tag = 'scoped memory for tpu_custom_call.1']
    #allocation5 [shape = 's32[2]{0}', space=sflag, size = 0x8, scoped, tag = 'scoped memory for tpu_custom_call.1']
    #allocation6 [shape = 'u8[65536]{0}', space=vmem, size = 0x10000, scoped, tag = 'input window, operand 1']
    #allocation7 [shape = 's32[2]{0}', space=sflag, size = 0x8, scoped, tag = 'scoped memory for tpu_custom_call.1']
    #allocation8 [shape = 'u8[4096]{0}', space=vmem, size = 0x1000, scoped, tag = 'output window, operand 0']
    %9 = vsyncpa [#allocation4], 0
    %10 = vsyncpa [#allocation7], 0
    %s11 = scalar_lea.sflag [#allocation7], 1
    %12 = vsyncpa %s11, 0
    %13 = vsyncpa [#allocation5], 0
    %s14 = scalar_lea.sflag [#allocation5], 1
    %15 = vsyncpa %s14, 0
    loop: start=0, step=1, limit=4
    $region2: #{tpu_custom_call.1} parent=1 // loop_pre_header
      _
    $region3: #{tpu_custom_call.1} parent=1 // loop_header
      %s17 = sphi 0, %s21
      %p18 = scmp.ge.s32.totalorder %s17, 4
      %s24 = sphi 0, %s36
      %s25 = sphi 0, %s32
      %s26 = sphi 0, %s24
      %s27 = sphi 0, %s25
      %s28 = sphi 0, %s26
      %s29 = sphi 0, %s27
      %s37 = sphi 0, %s37
      %s39 = sphi 0, %s37
      %s40 = sphi 0, %s39
      %s54 = sphi 0, %s40
      %s62 = sphi 0, %s64
      %s65 = sphi 0, %s62
      %s66 = sphi 0, %s65
      %s82 = sphi 0, %s66
      %s86 = sphi 0, %s86
      %s88 = sphi 0, %s86
      %s89 = sphi 0, %s88
      %s103 = sphi 0, %s89
      %s107 = sphi 0, %s107
      %s109 = sphi 0, %s107
      %s110 = sphi 0, %s109
      %s124 = sphi 0, %s110
      %s130 = sphi 0, %s132
      %s133 = sphi 0, %s130
      %s134 = sphi 0, %s133
      %s150 = sphi 0, %s134
    $region4: #{tpu_custom_call.1} parent=1 // loop_header_branch
      %20 = sbr.rel (%p18) target = $region8
    $region5: #{tpu_custom_call.1} parent=1 // loop_body
      %s22 = ssub.s32 %s17, 1
      %s23 = ssub.s32 %s17, 2
      %s30 = sadd.s32 1, %s25
      %p31 = scmp.ge.s32.totalorder %s30, 1
      %s32 = scalar_select %p31, 0, %s30
      %s33 = sadd.s32 1, %s24
      %s34 = scalar_select %p31, %s33, %s24
      %p35 = scmp.ge.s32.totalorder %s34, 2
      %s36 = scalar_select %p35, 0, %s34
      %s38 = sadd.s32 %s37, 1
      %p41 = scmp.eq.s32.totalorder %s17, 1
      %p42 = scmp.ne.s32.totalorder %s37, %s39
      %p43 = scmp.eq.s32.totalorder %s17, 0
      %p44 = por %p42, %p43
      %p45 = scmp.ne.s32.totalorder %s37, %s39
      %p46 = scmp.eq.s32.totalorder %s22, 1
      %p47 = por %p45, %p46
      %p48 = scmp.ne.s32.totalorder %s39, %s40
      %p49 = scmp.eq.s32.totalorder %s22, 0
      %p50 = por %p48, %p49
      %p51 = scmp.ne.s32.totalorder %s39, %s40
      %p52 = scmp.eq.s32.totalorder %s23, 1
      %p53 = por %p51, %p52
      %p55 = scmp.ne.s32.totalorder %s40, %s54
      %p56 = scmp.eq.s32.totalorder %s23, 0
      %p57 = por %p55, %p56
      %s58 = ssub.s32 %s25, %s32
      %s59 = ssub.s32 %s24, %s36
      %s60 = sor.u32 %s58, %s59
      %p61 = scmp.eq.s32.totalorder %s60, 0
      %s63 = sadd.s32 %s62, 1
      %s64 = scalar_select %p61, %s62, %s63
      %p67 = pneg %p61
      %p68 = scmp.eq.s32.totalorder %s17, 1
      %p69 = por %p67, %p68
      %p70 = scmp.ne.s32.totalorder %s62, %s65
      %p71 = scmp.eq.s32.totalorder %s17, 0
      %p72 = por %p70, %p71
      %p73 = scmp.ne.s32.totalorder %s62, %s65
      %p74 = scmp.eq.s32.totalorder %s22, 1
      %p75 = por %p73, %p74
      %p76 = scmp.ne.s32.totalorder %s65, %s66
      %p77 = scmp.eq.s32.totalorder %s22, 0
      %p78 = por %p76, %p77
      %p79 = scmp.ne.s32.totalorder %s65, %s66
      %p80 = scmp.eq.s32.totalorder %s23, 1
      %p81 = por %p79, %p80
      %p83 = scmp.ne.s32.totalorder %s66, %s82
      %p84 = scmp.eq.s32.totalorder %s23, 0
      %p85 = por %p83, %p84
      %s87 = sadd.s32 %s86, 1
      %p90 = scmp.eq.s32.totalorder %s17, 1
      %p91 = scmp.ne.s32.totalorder %s86, %s88
      %p92 = scmp.eq.s32.totalorder %s17, 0
      %p93 = por %p91, %p92
      %p94 = scmp.ne.s32.totalorder %s86, %s88
      %p95 = scmp.eq.s32.totalorder %s22, 1
      %p96 = por %p94, %p95
      %p97 = scmp.ne.s32.totalorder %s88, %s89
      %p98 = scmp.eq.s32.totalorder %s22, 0
      %p99 = por %p97, %p98
      %p100 = scmp.ne.s32.totalorder %s88, %s89
      %p101 = scmp.eq.s32.totalorder %s23, 1
      %p102 = por %p100, %p101
      %p104 = scmp.ne.s32.totalorder %s89, %s103
      %p105 = scmp.eq.s32.totalorder %s23, 0
      %p106 = por %p104, %p105
      %s108 = sadd.s32 %s107, 1
      %p111 = scmp.eq.s32.totalorder %s17, 1
      %p112 = scmp.ne.s32.totalorder %s107, %s109
      %p113 = scmp.eq.s32.totalorder %s17, 0
      %p114 = por %p112, %p113
      %p115 = scmp.ne.s32.totalorder %s107, %s109
      %p116 = scmp.eq.s32.totalorder %s22, 1
      %p117 = por %p115, %p116
      %p118 = scmp.ne.s32.totalorder %s109, %s110
      %p119 = scmp.eq.s32.totalorder %s22, 0
      %p120 = por %p118, %p119
      %p121 = scmp.ne.s32.totalorder %s109, %s110
      %p122 = scmp.eq.s32.totalorder %s23, 1
      %p123 = por %p121, %p122
      %p125 = scmp.ne.s32.totalorder %s110, %s124
      %p126 = scmp.eq.s32.totalorder %s23, 0
      %p127 = por %p125, %p126
      %s128 = ssub.s32 %s24, %s36
      %p129 = scmp.eq.s32.totalorder %s128, 0
      %s131 = sadd.s32 %s130, 1
      %s132 = scalar_select %p129, %s130, %s131
      %p135 = pneg %p129
      %p136 = scmp.eq.s32.totalorder %s17, 1
      %p137 = por %p135, %p136
      %p138 = scmp.ne.s32.totalorder %s130, %s133
      %p139 = scmp.eq.s32.totalorder %s17, 0
      %p140 = por %p138, %p139
      %p141 = scmp.ne.s32.totalorder %s130, %s133
      %p142 = scmp.eq.s32.totalorder %s22, 1
      %p143 = por %p141, %p142
      %p144 = scmp.ne.s32.totalorder %s133, %s134
      %p145 = scmp.eq.s32.totalorder %s22, 0
      %p146 = por %p144, %p145
      %p147 = scmp.ne.s32.totalorder %s133, %s134
      %p148 = scmp.eq.s32.totalorder %s23, 1
      %p149 = por %p147, %p148
      %p151 = scmp.ne.s32.totalorder %s134, %s150
      %p152 = scmp.eq.s32.totalorder %s23, 0
      %p153 = por %p151, %p152
      %p154 = scmp.le.s32.totalorder 1, %s17
      %p155 = scmp.lt.s32.totalorder %s17, 3
      %p156 = pnand %p154, %p155
      %p157 = pneg %p156
      // Predicated region
      $region9: #{tpu_custom_call.1} parent=5 // pred_check
        _
      $region10: #{tpu_custom_call.1} parent=5 // pred_check_branch
        %159 = sbr.rel (%p156) target = $region12
      $region11: #{tpu_custom_call.1} parent=5 // pred_region
        %s160 = ssub.s32 %s17, 1
        // Predicated region
        $region13: #{tpu_custom_call.1} parent=11 // pred_check
          %p161 = pneg %p50
        $region14: #{tpu_custom_call.1} parent=11 // pred_check_branch
          %163 = sbr.rel (%p161) target = $region16
        $region15: #{tpu_custom_call.1} parent=11 // pred_region
          %s165 = ssub.s32 64, 64
          %166 = vsyncadd [#allocation4], %s165
          %s168 = sshll.u32 [#allocation3], 4
          %s169 = int_to_ptr.vmem [resolvable:$true] %s168
          %171 = dma.hbm_to_vmem [thread:$0]  %s0, 64, %s169, [#allocation4]
        $region16: #{tpu_custom_call.1} parent=11 // pred_fallthru
          _
        // Predicated region
        $region17: #{tpu_custom_call.1} parent=11 // pred_check
          %p172 = pneg %p99
        $region18: #{tpu_custom_call.1} parent=11 // pred_check_branch
          %174 = sbr.rel (%p172) target = $region20
        $region19: #{tpu_custom_call.1} parent=11 // pred_region
          _
        $region20: #{tpu_custom_call.1} parent=11 // pred_fallthru
          _
        // Predicated region
        $region21: #{tpu_custom_call.1} parent=11 // pred_check
          %p175 = pneg %p120
        $region22: #{tpu_custom_call.1} parent=11 // pred_check_branch
          %177 = sbr.rel (%p175) target = $region24
        $region23: #{tpu_custom_call.1} parent=11 // pred_region
          _
        $region24: #{tpu_custom_call.1} parent=11 // pred_fallthru
          _
      $region12: #{tpu_custom_call.1} parent=5 // pred_fallthru
        _
      %p178 = scmp.lt.s32.totalorder %s17, 2
      // Predicated region
      $region25: #{tpu_custom_call.1} parent=5 // pred_check
        %p179 = pneg %p178
      $region26: #{tpu_custom_call.1} parent=5 // pred_check_branch
        %181 = sbr.rel (%p179) target = $region28
      $region27: #{tpu_custom_call.1} parent=5 // pred_region
        // Predicated region
        $region29: #{tpu_custom_call.1} parent=27 // pred_check
          %p182 = pneg %p72
        $region30: #{tpu_custom_call.1} parent=27 // pred_check_branch
          %184 = sbr.rel (%p182) target = $region32
        $region31: #{tpu_custom_call.1} parent=27 // pred_region
          %s185 = sand.u32 %s62, 1
          %s186 = scalar_lea.sflag [#allocation7], %s185
          %s187 = sand.u32 %s62, 1
          %s188 = smul.addr %s187, 64
          %s189 = scalar_lea.vmem [#allocation6], %s188
          %s190 = smul.u32 16, %s25
          %s192 = ssub.s32 1024, 1024
          %193 = vsyncadd %s186, %s192
          %s194 = smul.addr %s190, 2
          %s195 = sadd.s32 %s24, %s194
          %s196 = smul.addr %s195, 64
          %s197 = scalar_lea.hbm %s1, %s196
          %s198 = sshll.u32 %s189, 4
          %s199 = int_to_ptr.vmem [resolvable:$true] %s198
          %204 = dma.hbm_to_vmem [thread:$0]  %s197, 1024, %s199, %s186, 128, 64, 4
        $region32: #{tpu_custom_call.1} parent=27 // pred_fallthru
          _
      $region28: #{tpu_custom_call.1} parent=5 // pred_fallthru
        _
      %p205 = scmp.le.s32.totalorder 1, %s17
      %p206 = scmp.lt.s32.totalorder %s17, 3
      %p207 = pnand %p205, %p206
      %p208 = pneg %p207
      // Predicated region
      $region33: #{tpu_custom_call.1} parent=5 // pred_check
        _
      $region34: #{tpu_custom_call.1} parent=5 // pred_check_branch
        %210 = sbr.rel (%p207) target = $region36
      $region35: #{tpu_custom_call.1} parent=5 // pred_region
        %s211 = ssub.s32 %s17, 1
        // Predicated region
        $region37: #{tpu_custom_call.1} parent=35 // pred_check
          %p212 = pneg %p50
        $region38: #{tpu_custom_call.1} parent=35 // pred_check_branch
          %214 = sbr.rel (%p212) target = $region40
        $region39: #{tpu_custom_call.1} parent=35 // pred_region
          %215 = dma.done [#allocation4], 64
        $region40: #{tpu_custom_call.1} parent=35 // pred_fallthru
          _
        %s216 = sand.u32 %s65, 1
        %s217 = scalar_lea.sflag [#allocation7], %s216
        %s218 = sand.u32 %s65, 1
        %s219 = smul.addr %s218, 64
        %s220 = scalar_lea.vmem [#allocation6], %s219
        // Predicated region
        $region41: #{tpu_custom_call.1} parent=35 // pred_check
          %p221 = pneg %p78
        $region42: #{tpu_custom_call.1} parent=35 // pred_check_branch
          %223 = sbr.rel (%p221) target = $region44
        $region43: #{tpu_custom_call.1} parent=35 // pred_region
          %224 = dma.done %s217, 1024
        $region44: #{tpu_custom_call.1} parent=35 // pred_fallthru
          _
        %p225 = pneg %p50
        %p226 = pneg %p47
        %s227 = sand.u32 %s65, 1
        %s228 = scalar_lea.sflag [#allocation7], %s227
        %s229 = sand.u32 %s65, 1
        %s230 = smul.addr %s229, 64
        %s231 = scalar_lea.vmem [#allocation6], %s230
        %p232 = pneg %p78
        %p233 = pneg %p75
        %p234 = pneg %p99
        %p235 = pneg %p96
        %p236 = pneg %p120
        %p237 = pneg %p117
        %p238 = pneg %p146
        %p239 = pneg %p143
        %s240 = sand.u32 %s133, 1
        %s241 = scalar_lea.sflag [#allocation5], %s240
        %s242 = sand.u32 %s133, 1
        %s243 = smul.addr %s242, 4
        %s244 = scalar_lea.vmem [#allocation8], %s243
        %s245 = smul.u32 16, %s27
        %p247 = scmp.eq.s32.totalorder %s27, 0
        // Predicated region
        $region45: #{tpu_custom_call.1} parent=35 // pred_check
          %p248 = pneg %p247
        $region46: #{tpu_custom_call.1} parent=35 // pred_check_branch
          %250 = sbr.rel (%p248) target = $region48
        $region47: #{tpu_custom_call.1} parent=35 // pred_region
          %251 = vst [vmem:[#allocation2] sm:$0xff] 0.0
        $region48: #{tpu_custom_call.1} parent=35 // pred_fallthru
          _
        %v252 = vld [vmem:[#allocation3] sm:$0xf]
        %v253 = vld [vmem:[#allocation2] sm:$0xff]
        %v254 = vld [vmem:[%s220] sm:$0xf]
        %v255 = vld [vmem:[%s220 + $0x4] sm:$0xf]
        %v256 = vld [vmem:[%s220 + $0x8] sm:$0xf]
        %v257 = vld [vmem:[%s220 + $0xc] sm:$0xf]
        %v258 = vld [vmem:[%s220 + $0x10] sm:$0xf]
        %v259 = vld [vmem:[%s220 + $0x14] sm:$0xf]
        %v260 = vld [vmem:[%s220 + $0x18] sm:$0xf]
        %v261 = vld [vmem:[%s220 + $0x1c] sm:$0xf]
        %v262 = vld [vmem:[%s220 + $0x20] sm:$0xf]
        %v263 = vld [vmem:[%s220 + $0x24] sm:$0xf]
        %v264 = vld [vmem:[%s220 + $0x28] sm:$0xf]
        %v265 = vld [vmem:[%s220 + $0x2c] sm:$0xf]
        %v266 = vld [vmem:[%s220 + $0x30] sm:$0xf]
        %v267 = vld [vmem:[%s220 + $0x34] sm:$0xf]
        %v268 = vld [vmem:[%s220 + $0x38] sm:$0xf]
        %v269 = vld [vmem:[%s220 + $0x3c] sm:$0xf]
        %v286 = vunpack.c.l.b16 %v254
        %v287 = vunpack.c.l.b16 %v255
        %v288 = vunpack.c.l.b16 %v256
        %v289 = vunpack.c.l.b16 %v257
        %v290 = vunpack.c.l.b16 %v258
        %v291 = vunpack.c.l.b16 %v259
        %v292 = vunpack.c.l.b16 %v260
        %v293 = vunpack.c.l.b16 %v261
        %v294 = vunpack.c.l.b16 %v262
        %v295 = vunpack.c.l.b16 %v263
        %v296 = vunpack.c.l.b16 %v264
        %v297 = vunpack.c.l.b16 %v265
        %v298 = vunpack.c.l.b16 %v266
        %v299 = vunpack.c.l.b16 %v267
        %v300 = vunpack.c.l.b16 %v268
        %v301 = vunpack.c.l.b16 %v269
        %v302 = vpack.c.b16 %v287, %v286
        %v303 = vpack.c.b16 %v289, %v288
        %v304 = vpack.c.b16 %v291, %v290
        %v305 = vpack.c.b16 %v293, %v292
        %v306 = vpack.c.b16 %v295, %v294
        %v307 = vpack.c.b16 %v297, %v296
        %v308 = vpack.c.b16 %v299, %v298
        %v309 = vpack.c.b16 %v301, %v300
        %318 = vmatprep.subr.bf16.mxu0 0
        %319 = vmatpush1.bf16.msra.mxu0 %v302
        %320 = vmatprep.subr.bf16.mxu0 0
        %321 = vmatpush1.bf16.msra.mxu0 %v303
        %322 = vmatprep.subr.bf16.mxu0 0
        %323 = vmatpush1.bf16.msra.mxu0 %v304
        %324 = vmatprep.subr.bf16.mxu0 0
        %325 = vmatpush1.bf16.msra.mxu0 %v305
        %326 = vmatprep.subr.bf16.mxu0 0
        %327 = vmatpush1.bf16.msra.mxu0 %v306
        %328 = vmatprep.subr.bf16.mxu0 0
        %329 = vmatpush1.bf16.msra.mxu0 %v307
        %330 = vmatprep.subr.bf16.mxu0 0
        %331 = vmatpush1.bf16.msra.mxu0 %v308
        %332 = vmatprep.subr.bf16.mxu0 0
        %333 = vmatpush1.bf16.msra.mxu0 %v309
        %334 = vmatprep.subr.bf16.mxu0 0
        %335 = vmatpush1.bf16.msra.mxu0 0
        %336 = vmatprep.subr.bf16.mxu0 0
        %337 = vmatpush1.bf16.msra.mxu0 0
        %338 = vmatprep.subr.bf16.mxu0 0
        %339 = vmatpush1.bf16.msra.mxu0 0
        %340 = vmatprep.subr.bf16.mxu0 0
        %341 = vmatpush1.bf16.msra.mxu0 0
        %342 = vmatprep.subr.bf16.mxu0 0
        %343 = vmatpush1.bf16.msra.mxu0 0
        %344 = vmatprep.subr.bf16.mxu0 0
        %345 = vmatpush1.bf16.msra.mxu0 0
        %346 = vmatprep.subr.bf16.mxu0 0
        %347 = vmatpush1.bf16.msra.mxu0 0
        %348 = vmatprep.subr.bf16.mxu0 0
        %349 = vmatpush1.bf16.msra.mxu0 0
        %350 = vmatprep.mubr.bf16.mxu0 0
        %351 = vmatmul.mubr.bf16.gmra.mrb[0].mxu0 %v252
        %v352 = vpop.f32.mrb[0].mxu0
        %v353 = vadd.f32 0.0, %v352
        %v354 = vpop.f32.mrb[0].mxu0
        %v355 = vpop.f32.mrb[0].mxu0
        %v356 = vpop.f32.mrb[0].mxu0
        %357 = vdwg.mxu0
        %v358 = vadd.f32 %v253, %v353
        %359 = vst [vmem:[#allocation2] sm:$0xff] %v358
        // Predicated region
        $region49: #{tpu_custom_call.1} parent=35 // pred_check
          %p360 = pneg %p247
        $region50: #{tpu_custom_call.1} parent=35 // pred_check_branch
          %362 = sbr.rel (%p360) target = $region52
        $region51: #{tpu_custom_call.1} parent=35 // pred_region
          %v363 = vld [vmem:[#allocation2] sm:$0xff]
          %s364 = smul.u32 %s26, 128
          %s365 = sshra.s32 %s364, 7
          %s366 = sand.u32 %s364, 127
          %s367 = scalar_lea.vmem %s2, %s365
          %v368 = vld [vmem:[%s367] sm:$0x1]
          %s369 = scalar_lea.vmem %s3, %s365
          %v370 = vld [vmem:[%s369] sm:$0x1]
          %v371 = vrot.slane %v363, 4
          %v372 = vadd.f32 %v363, %v371
          %v373 = vrot.slane %v372, 2
          %v374 = vadd.f32 %v372, %v373
          %v375 = vrot.slane %v374, 1
          %v376 = vadd.f32 %v374, %v375
          %v377 = vrcp.pop 8.0
          %v378 = vmul.f32 %v376, %v377
          %v379 = vmul.f32 %v363, %v363
          %v380 = vrot.slane %v379, 4
          %v381 = vadd.f32 %v379, %v380
          %v382 = vrot.slane %v381, 2
          %v383 = vadd.f32 %v381, %v382
          %v384 = vrot.slane %v383, 1
          %v385 = vadd.f32 %v383, %v384
          %v386 = vmul.f32 %v385, %v377
          %v387 = vmul.f32 %v378, %v378
          %v388 = vsub.f32 %v386, %v387
          %v389 = vmax.f32 %v388, 0.0
          %v390 = vadd.f32 %v389, 1e-05
          %v391 = vrsqrt.pop %v390
          %v392 = vmul.f32 %v391, %v368
          %v393 = vmul.f32 %v378, %v392
          %v394 = vsub.f32 %v370, %v393
          %v395 = vlaneseq
          %v396 = vshrl.u32 %v395, 7
          %v397 = vsub.s32 0, %v396
          %v398 = vrot.slane %v392, %v397
          %v399 = vmul.f32 %v363, %v398
          %v401 = vlaneseq
          %v402 = vshrl.u32 %v401, 7
          %v403 = vsub.s32 0, %v402
          %v404 = vrot.slane %v394, %v403
          %v406 = vadd.f32 %v399, %v404
          %v407 = vmax.f32 %v406, 0.0
          %v408 = vpack.c.bf16 %v407, %v407
          %409 = vst [vmem:[%s244] sm:$0xf] %v408
        $region52: #{tpu_custom_call.1} parent=35 // pred_fallthru
          _
        %s410 = sand.u32 %s133, 1
        %s411 = scalar_lea.sflag [#allocation5], %s410
        %s412 = sand.u32 %s133, 1
        %s413 = smul.addr %s412, 4
        %s414 = scalar_lea.vmem [#allocation8], %s413
        // Predicated region
        $region53: #{tpu_custom_call.1} parent=35 // pred_check
          %p415 = pneg %p143
        $region54: #{tpu_custom_call.1} parent=35 // pred_check_branch
          %417 = sbr.rel (%p415) target = $region56
        $region55: #{tpu_custom_call.1} parent=35 // pred_region
          %s419 = ssub.s32 64, 64
          %420 = vsyncadd %s411, %s419
          %s421 = smul.addr %s26, 64
          %s422 = scalar_lea.hbm %s4, %s421
          %s424 = sshll.u32 %s414, 4
          %s425 = int_to_ptr.vmem [resolvable:$true] %s424
          %427 = dma.vmem_to_hbm [thread:$0]  %s425, 64, %s422, %s411
        $region56: #{tpu_custom_call.1} parent=35 // pred_fallthru
          _
      $region36: #{tpu_custom_call.1} parent=5 // pred_fallthru
        _
      %p428 = scmp.le.s32.totalorder 2, %s17
      // Predicated region
      $region57: #{tpu_custom_call.1} parent=5 // pred_check
        %p429 = pneg %p428
      $region58: #{tpu_custom_call.1} parent=5 // pred_check_branch
        %431 = sbr.rel (%p429) target = $region60
      $region59: #{tpu_custom_call.1} parent=5 // pred_region
        %s432 = ssub.s32 %s17, 2
        // Predicated region
        $region61: #{tpu_custom_call.1} parent=59 // pred_check
          %p433 = pneg %p149
        $region62: #{tpu_custom_call.1} parent=59 // pred_check_branch
          %435 = sbr.rel (%p433) target = $region64
        $region63: #{tpu_custom_call.1} parent=59 // pred_region
          %s436 = sand.u32 %s134, 1
          %s437 = scalar_lea.sflag [#allocation5], %s436
          %s438 = sand.u32 %s134, 1
          %s439 = smul.addr %s438, 4
          %s440 = scalar_lea.vmem [#allocation8], %s439
          %441 = dma.done %s437, 64
        $region64: #{tpu_custom_call.1} parent=59 // pred_fallthru
          _
      $region60: #{tpu_custom_call.1} parent=5 // pred_fallthru
        _
    $region6: #{tpu_custom_call.1} parent=1 // loop_footer
      %s21 = sadd.s32 1, %s17
    $region7: #{tpu_custom_call.1} parent=1 // loop_footer_branch
      %16 = sbr.rel target = $region3
    $region8: #{tpu_custom_call.1} parent=1 // loop_exit
      _
    %442 = vsyncpa [#allocation4], 1
    %s443 = scalar_lea.sflag [#allocation4], 1
    %444 = vsyncpa %s443, 1
    %445 = vsyncpa [#allocation7], 1
    %s446 = scalar_lea.sflag [#allocation7], 1
    %447 = vsyncpa %s446, 1
    %448 = vsyncpa [#allocation5], 1
    %s449 = scalar_lea.sflag [#allocation5], 1
    %450 = vsyncpa %s449, 1

</llo_original>
